<compile_context>
chip_gen: v7x
topology: tpu7x:2x2x1
jax: 0.10.0
libtpu: 0.0.40
codegen_flags: <defaults>
</compile_context>

<pallas_src>
import math

import jax
import jax.numpy as jnp
from jax.experimental import pallas as pl
from jax.experimental.pallas import tpu as pltpu


def _round_up(x, m):
    return ((x + m - 1) // m) * m


def _pick_tile(d128, cap):
    """Pick a (multiple-of-128) tile <= cap for a dim already padded to 128.

    Returns the full dim if it fits under cap, otherwise the largest tile with
    <= 12.5% padding waste (128 always qualifies with zero waste)."""
    if d128 <= cap:
        return d128
    t = max(128, (cap // 128) * 128)
    while t > 128:
        pad = _round_up(d128, t) - d128
        if pad * 8 <= d128:
            return t
        t -= 128
    return 128


# ----------------------------------------------------------------------------
# Kernel
# ----------------------------------------------------------------------------

def _make_noisy_linear_kernel(tn, tk, single_k):
    """Build the kernel with static tile sizes and fast-path flag baked in."""

    def kernel(x_ref, wmu_ref, wsig_ref, eps_in_ref, eps_out_ref,
               bmu_ref, bsig_ref, o_ref, *acc_refs):
        j = pl.program_id(1)
        k = pl.program_id(2)

        # Resident [1, Kp] noise row, sliced to the current K tile (lane aligned).
        k0 = pl.multiple_of(k * tk, 128)
        eps_i = eps_in_ref[:, pl.ds(k0, tk)]                 # [1, tk] f32

        x = x_ref[...]                                       # [tm, tk] f32
        xs = x * eps_i                                       # f32 VPU (v5e-legal)

        # Feed the MXU in the weights' storage dtype (bf16 path: full-rate
        # bf16 matmul with f32 accumulation; f32 path: plain f32 matmul).
        wdt = wmu_ref.dtype
        mu_part = jnp.dot(x.astype(wdt), wmu_ref[...],
                          preferred_element_type=jnp.float32)
        sig_part = jnp.dot(xs.astype(wdt), wsig_ref[...],
                           preferred_element_type=jnp.float32)

        def finalize(mu_acc, sig_acc):
            j0 = pl.multiple_of(j * tn, 128)
            eps_o = eps_out_ref[:, pl.ds(j0, tn)]            # [1, tn]
            b = bmu_ref[:, pl.ds(j0, tn)] + bsig_ref[:, pl.ds(j0, tn)] * eps_o
            o_ref[...] = (mu_acc + sig_acc * eps_o + b).astype(o_ref.dtype)

        if single_k:
            # K fits in a single tile: no scratch accumulators, direct write.
            finalize(mu_part, sig_part)
        else:
            acc_mu, acc_sig = acc_refs

            @pl.when(k == 0)
            def _():
                acc_mu[...] = jnp.zeros_like(acc_mu)
                acc_sig[...] = jnp.zeros_like(acc_sig)

            acc_mu[...] += mu_part
            acc_sig[...] += sig_part

            @pl.when(k == pl.num_programs(2) - 1)
            def _():
                finalize(acc_mu[...], acc_sig[...])

    return kernel


# ----------------------------------------------------------------------------
# One-time parameter preparation (do NOT call per forward step)
# ----------------------------------------------------------------------------

def prepare_noisy_linear(weight_mu, weight_sigma, bias_mu, bias_sigma, *,
                         weight_dtype=jnp.bfloat16, batch_hint=32,
                         max_tn=512, max_tk=2048):
    """Transpose to [in, out], pad to tile multiples and cast weights once."""
    out_f, in_f = weight_mu.shape
    Np128 = _round_up(out_f, 128)
    Kp128 = _round_up(in_f, 128)

    tn = _pick_tile(Np128, max_tn)
    tk = _pick_tile(Kp128, max_tk)

    # v7x has 2 TensorCores sharded over the "parallel" grid axes; if both
    # parallel extents would collapse to 1 for the expected batch, split N so
    # the second core has work.  Neutral on v5e/v6e (single TC).
    tm_hint = min(256, _round_up(max(batch_hint, 1), 8))
    if (pl.cdiv(max(batch_hint, 1), tm_hint) * pl.cdiv(Np128, tn) < 2
            and Np128 >= 256):
        tn = _pick_tile(Np128, max(128, (tn // 2 // 128) * 128))

    Np = _round_up(Np128, tn)
    Kp = _round_up(Kp128, tk)

    def pad2(a, rows, cols, dtype):
        a = a.astype(dtype)
        return jnp.pad(a, ((0, rows - a.shape[0]), (0, cols - a.shape[1])))

    return dict(
        # [in, out] layout: MXU contracts x [tm, tk] with w [tk, tn] directly.
        wmu_t=pad2(weight_mu.T, Kp, Np, weight_dtype),
        wsig_t=pad2(weight_sigma.T, Kp, Np, weight_dtype),
        bmu=pad2(bias_mu.reshape(1, -1), 1, Np, jnp.float32),
        bsig=pad2(bias_sigma.reshape(1, -1), 1, Np, jnp.float32),
        in_features=in_f, out_features=out_f,
        tn=tn, tk=tk, Np=Np, Kp=Kp,
    )


def prepare_noise(eps_in, eps_out, params):
    """Pad the factorized noise vectors (call per reset_noise; O(K+N) work)."""
    Kp, Np = params["Kp"], params["Np"]
    eps_in_row = jnp.pad(eps_in.astype(jnp.float32).reshape(1, -1),
                         ((0, 0), (0, Kp - eps_in.shape[0])))
    eps_out_row = jnp.pad(eps_out.astype(jnp.float32).reshape(1, -1),
                          ((0, 0), (0, Np - eps_out.shape[0])))
    return eps_in_row, eps_out_row


# ----------------------------------------------------------------------------
# Forward
# ----------------------------------------------------------------------------

def noisy_linear(x, params, eps_in_row, eps_out_row, *, max_tm=256):
    """NoisyLinear forward.  x: [B, in_features], params from prepare_noisy_linear."""
    B, in_f = x.shape
    assert in_f == params["in_features"]
    out_f = params["out_features"]
    tn, tk, Np, Kp = params["tn"], params["tk"], params["Np"], params["Kp"]

    tm = min(max_tm, _round_up(B, 8))       # tm=256 for large batches
    Mp = _round_up(B, tm)
    xp = jnp.pad(x.astype(jnp.float32), ((0, Mp - B), (0, Kp - in_f)))

    grid = (Mp // tm, Np // tn, Kp // tk)
    single_k = grid[2] == 1

    kernel = _make_noisy_linear_kernel(tn, tk, single_k)
    scratch = () if single_k else (pltpu.VMEM((tm, tn), jnp.float32),
                                   pltpu.VMEM((tm, tn), jnp.float32))

    out = pl.pallas_call(
        kernel,
        out_shape=jax.ShapeDtypeStruct((Mp, Np), x.dtype),
        grid_spec=pltpu.PrefetchScalarGridSpec(
            num_scalar_prefetch=0,
            grid=grid,
            in_specs=[
                pl.BlockSpec((tm, tk), lambda i, j, k: (i, k)),   # x (f32)
                pl.BlockSpec((tk, tn), lambda i, j, k: (k, j)),   # W_mu^T
                pl.BlockSpec((tk, tn), lambda i, j, k: (k, j)),   # W_sigma^T
                pl.BlockSpec((1, Kp), lambda i, j, k: (0, 0)),    # eps_in   (resident)
                pl.BlockSpec((1, Np), lambda i, j, k: (0, 0)),    # eps_out  (resident)
                pl.BlockSpec((1, Np), lambda i, j, k: (0, 0)),    # bias_mu  (resident)
                pl.BlockSpec((1, Np), lambda i, j, k: (0, 0)),    # bias_sig (resident)
            ],
            out_specs=pl.BlockSpec((tm, tn), lambda i, j, k: (i, j)),
            scratch_shapes=scratch,
        ),
        compiler_params=pltpu.CompilerParams(
            dimension_semantics=("parallel", "parallel", "arbitrary"),
            vmem_limit_bytes=48 * 1024 * 1024),
    )(xp, params["wmu_t"], params["wsig_t"], eps_in_row, eps_out_row,
      params["bmu"], params["bsig"])

    return out[:B, :out_f]


# ----------------------------------------------------------------------------
# Plain-JAX glue: parameter init + factorized noise (reset_parameters /
# reset_noise equivalents).  Noise stays factorized; no outer product is built.
# ----------------------------------------------------------------------------

def _scale_noise(key, size):
    # f(x) = sign(x) * sqrt(|x|)
    x = jax.random.normal(key, (size,), dtype=jnp.float32)
    return jnp.sign(x) * jnp.sqrt(jnp.abs(x))


def init_noisy_linear_params(key, in_features, out_features, sigma_zero=0.5):
    k_wmu, k_bmu, k_ein, k_eout = jax.random.split(key, 4)
    mu_range = 1.0 / math.sqrt(in_features)

    weight_mu = jax.random.uniform(
        k_wmu, (out_features, in_features), jnp.float32,
        minval=-mu_range, maxval=mu_range)
    weight_sigma = jnp.full((out_features, in_features),
                            sigma_zero / math.sqrt(in_features), jnp.float32)
    bias_mu = jax.random.uniform(
        k_bmu, (out_features,), jnp.float32, minval=-mu_range, maxval=mu_range)
    bias_sigma = jnp.full((out_features,),
                          sigma_zero / math.sqrt(out_features), jnp.float32)

    # reset_noise(): keep the factorized vectors (eps_out ⊗ eps_in is applied
    # algebraically inside the kernel; bias_epsilon == eps_out).
    eps_in = _scale_noise(k_ein, in_features)
    eps_out = _scale_noise(k_eout, out_features)

    return weight_mu, weight_sigma, bias_mu, bias_sigma, eps_in, eps_out


if __name__ == "__main__":
    root = jax.random.PRNGKey(0)

    # (batch, in_f, out_f, weight_dtype, max_tk, tol)
    cases = [
        (4,   96,  160, jnp.float32,  2048, 1e-2),   # padding + single-K fast path (f32 weights)
        (8,   512, 512, jnp.bfloat16, 2048, 5e-2),   # N split for v7x dual-TC (bf16 weights)
        (16,  256, 128, jnp.bfloat16, 128,  5e-2),   # forced multi-K accumulator path
        (300, 128, 384, jnp.bfloat16, 2048, 5e-2),   # multi-M blocks, tm=256
    ]

    for idx, (batch, in_f, out_f, wdt, max_tk, tol) in enumerate(cases):
        kp, kx = jax.random.split(jax.random.fold_in(root, idx))
        wmu, wsig, bmu, bsig, eps_in, eps_out = init_noisy_linear_params(
            kp, in_f, out_f)
        x = jax.random.normal(kx, (batch, in_f), dtype=jnp.float32)

        params = prepare_noisy_linear(wmu, wsig, bmu, bsig,
                                      weight_dtype=wdt, batch_hint=batch,
                                      max_tk=max_tk)
        eps_in_row, eps_out_row = prepare_noise(eps_in, eps_out, params)

        out = noisy_linear(x, params, eps_in_row, eps_out_row)
        out = jax.block_until_ready(out)

        # Pure-JAX f32 reference (exactly the PyTorch forward semantics).
        w_eff = wmu + wsig * jnp.outer(eps_out, eps_in)
        b_eff = bmu + bsig * eps_out
        ref = x @ w_eff.T + b_eff

        assert out.shape == (batch, out_f)
        assert jnp.allclose(out, ref, atol=tol, rtol=tol), f"case {idx} mismatch"

    print("KERNEL_OK")
</pallas_src>

<mosaic_0001>
module attributes {stable_mosaic.version = 11 : i64} {
  func.func @kernel(%arg0: i32, %arg1: i32, %arg2: i32, %arg3: memref<8x128xf32, #tpu.memory_space<vmem>>, %arg4: memref<128x128xf32, #tpu.memory_space<vmem>>, %arg5: memref<128x128xf32, #tpu.memory_space<vmem>>, %arg6: memref<1x128xf32, #tpu.memory_space<vmem>>, %arg7: memref<1x256xf32, #tpu.memory_space<vmem>>, %arg8: memref<1x256xf32, #tpu.memory_space<vmem>>, %arg9: memref<1x256xf32, #tpu.memory_space<vmem>>, %arg10: memref<8x128xf32, #tpu.memory_space<vmem>>) attributes {dimension_semantics = [#tpu.dimension_semantics<parallel>, #tpu.dimension_semantics<parallel>, #tpu.dimension_semantics<arbitrary>], iteration_bounds = array<i64: 1, 2, 1>, scalar_prefetch = 0 : i64, scratch_operands = 0 : i64, tpu.core_type = #tpu.core_type<tc>, window_params = [{transform_indices = @transform_0, window_bounds = array<i64: 8, 128>}, {transform_indices = @transform_1, window_bounds = array<i64: 128, 128>}, {transform_indices = @transform_2, window_bounds = array<i64: 128, 128>}, {pipeline_mode = #tpu.pipeline_mode<synchronous>, transform_indices = @transform_3, window_bounds = array<i64: 1, 128>}, {pipeline_mode = #tpu.pipeline_mode<synchronous>, transform_indices = @transform_4, window_bounds = array<i64: 1, 256>}, {pipeline_mode = #tpu.pipeline_mode<synchronous>, transform_indices = @transform_5, window_bounds = array<i64: 1, 256>}, {pipeline_mode = #tpu.pipeline_mode<synchronous>, transform_indices = @transform_6, window_bounds = array<i64: 1, 256>}, {transform_indices = @transform_7, window_bounds = array<i64: 8, 128>}]} {
    %c128_i32 = arith.constant 128 : i32
    %0 = arith.muli %arg2, %c128_i32 : i32
    %1 = tpu.assume_multiple %0, 128 : i32
    %c0 = arith.constant 0 : index
    %2 = arith.index_cast %1 : i32 to index
    %3 = vector.load %arg6[%c0, %2] : memref<1x128xf32, #tpu.memory_space<vmem>>, vector<1x128xf32>
    %c0_0 = arith.constant 0 : index
    %c0_1 = arith.constant 0 : index
    %4 = vector.load %arg3[%c0_0, %c0_1] : memref<8x128xf32, #tpu.memory_space<vmem>>, vector<8x128xf32>
    %5 = vector.broadcast %3 : vector<1x128xf32> to vector<8x128xf32>
    %6 = arith.mulf %4, %5 : vector<8x128xf32>
    %c0_2 = arith.constant 0 : index
    %c0_3 = arith.constant 0 : index
    %7 = vector.load %arg4[%c0_2, %c0_3] : memref<128x128xf32, #tpu.memory_space<vmem>>, vector<128x128xf32>
    %cst = arith.constant dense<0.000000e+00> : vector<8x128xf32>
    %8 = tpu.matmul %4, %7, %cst {dimension_numbers = #tpu.dot_dimension_numbers<[1], [0], [0], [1], [0, 0, 1, 1], [], []>} : vector<8x128xf32>, vector<128x128xf32>, vector<8x128xf32> -> vector<8x128xf32>
    %c0_4 = arith.constant 0 : index
    %c0_5 = arith.constant 0 : index
    %9 = vector.load %arg5[%c0_4, %c0_5] : memref<128x128xf32, #tpu.memory_space<vmem>>, vector<128x128xf32>
    %cst_6 = arith.constant dense<0.000000e+00> : vector<8x128xf32>
    %10 = tpu.matmul %6, %9, %cst_6 {dimension_numbers = #tpu.dot_dimension_numbers<[1], [0], [0], [1], [0, 0, 1, 1], [], []>} : vector<8x128xf32>, vector<128x128xf32>, vector<8x128xf32> -> vector<8x128xf32>
    %c128_i32_7 = arith.constant 128 : i32
    %11 = arith.muli %arg1, %c128_i32_7 : i32
    %12 = tpu.assume_multiple %11, 128 : i32
    %c0_8 = arith.constant 0 : index
    %13 = arith.index_cast %12 : i32 to index
    %14 = vector.load %arg7[%c0_8, %13] : memref<1x256xf32, #tpu.memory_space<vmem>>, vector<1x128xf32>
    %c0_9 = arith.constant 0 : index
    %15 = arith.index_cast %12 : i32 to index
    %16 = vector.load %arg8[%c0_9, %15] : memref<1x256xf32, #tpu.memory_space<vmem>>, vector<1x128xf32>
    %c0_10 = arith.constant 0 : index
    %17 = arith.index_cast %12 : i32 to index
    %18 = vector.load %arg9[%c0_10, %17] : memref<1x256xf32, #tpu.memory_space<vmem>>, vector<1x128xf32>
    %19 = arith.mulf %18, %14 : vector<1x128xf32>
    %20 = arith.addf %16, %19 : vector<1x128xf32>
    %21 = vector.broadcast %14 : vector<1x128xf32> to vector<8x128xf32>
    %22 = arith.mulf %10, %21 : vector<8x128xf32>
    %23 = arith.addf %8, %22 : vector<8x128xf32>
    %24 = vector.broadcast %20 : vector<1x128xf32> to vector<8x128xf32>
    %25 = arith.addf %23, %24 : vector<8x128xf32>
    %c0_11 = arith.constant 0 : index
    %c0_12 = arith.constant 0 : index
    %26 = vector.load %arg10[%c0_11, %c0_12] : memref<8x128xf32, #tpu.memory_space<vmem>>, vector<8x128xf32>
    tpu.vector_store %arg10[%c0_11, %c0_12], %25 {strides = array<i32>} : memref<8x128xf32, #tpu.memory_space<vmem>>, vector<8x128xf32>,
    return
  }
  func.func @transform_0(%arg0: i32, %arg1: i32, %arg2: i32) -> (i32, i32) {
    %c0_i32 = arith.constant 0 : i32
    return %arg0, %arg2 : i32, i32
  }
  func.func @transform_1(%arg0: i32, %arg1: i32, %arg2: i32) -> (i32, i32) {
    %c0_i32 = arith.constant 0 : i32
    return %arg2, %arg1 : i32, i32
  }
  func.func @transform_2(%arg0: i32, %arg1: i32, %arg2: i32) -> (i32, i32) {
    %c0_i32 = arith.constant 0 : i32
    return %arg2, %arg1 : i32, i32
  }
  func.func @transform_3(%arg0: i32, %arg1: i32, %arg2: i32) -> (i32, i32) {
    %c0_i32 = arith.constant 0 : i32
    %c0_i32_0 = arith.constant 0 : i32
    %c0_i32_1 = arith.constant 0 : i32
    return %c0_i32, %c0_i32_0 : i32, i32
  }
  func.func @transform_4(%arg0: i32, %arg1: i32, %arg2: i32) -> (i32, i32) {
    %c0_i32 = arith.constant 0 : i32
    %c0_i32_0 = arith.constant 0 : i32
    %c0_i32_1 = arith.constant 0 : i32
    return %c0_i32, %c0_i32_0 : i32, i32
  }
  func.func @transform_5(%arg0: i32, %arg1: i32, %arg2: i32) -> (i32, i32) {
    %c0_i32 = arith.constant 0 : i32
    %c0_i32_0 = arith.constant 0 : i32
    %c0_i32_1 = arith.constant 0 : i32
    return %c0_i32, %c0_i32_0 : i32, i32
  }
  func.func @transform_6(%arg0: i32, %arg1: i32, %arg2: i32) -> (i32, i32) {
    %c0_i32 = arith.constant 0 : i32
    %c0_i32_0 = arith.constant 0 : i32
    %c0_i32_1 = arith.constant 0 : i32
    return %c0_i32, %c0_i32_0 : i32, i32
  }
  func.func @transform_7(%arg0: i32, %arg1: i32, %arg2: i32) -> (i32, i32) {
    %c0_i32 = arith.constant 0 : i32
    return %arg0, %arg1 : i32, i32
  }
}

</mosaic_0001>

<llo_original>
// kernel: tpu_custom_call.1
$region0: #{tpu_custom_call.1}
  #allocation0 [shape = 'u32[]', space=smem, size = 0x4, offset = 0x4, fixed_abs, tag = 'smem constant byte address 0x4 - core index']
  #allocation1 [shape = 'u32[144,128]{1,0:T(1,128)}', space=vmem, size = 0x12000, scoped, tag = 'internal scratch']
  %s0 = inlined_call_operand.hbm [shape: f32[8,128], index: 0, kind: input, shape index: {}]
  %s1 = inlined_call_operand.hbm [shape: f32[128,256], index: 1, kind: input, shape index: {}]
  %s2 = inlined_call_operand.hbm [shape: f32[128,256], index: 2, kind: input, shape index: {}]
  %s3 = inlined_call_operand.vmem [shape: f32[1,128], index: 3, kind: input, shape index: {}]
  %s4 = inlined_call_operand.vmem [shape: f32[1,256], index: 4, kind: input, shape index: {}]
  %s5 = inlined_call_operand.vmem [shape: f32[1,256], index: 5, kind: input, shape index: {}]
  %s6 = inlined_call_operand.vmem [shape: f32[1,256], index: 6, kind: input, shape index: {}]
  %s7 = inlined_call_operand.hbm [shape: f32[8,256], index: 7, kind: output, shape index: {}]
  %s8 = sld [smem:[#allocation0]]
  $region73: #{tpu_custom_call.1} parent=0
    _
  %s10 = ssub.s32 1, %s8
  %s11 = scalar_select 0, %s10, %s8
  $region1: #{tpu_custom_call.1} parent=0
    #allocation2 [shape = 'u8[4096]{0}', space=vmem, size = 0x1000, scoped, tag = 'input window, operand 0, single buffered']
    #allocation3 [shape = 's32[2]{0}', space=sflag, size = 0x8, scoped, tag = 'scoped memory for tpu_custom_call.1']
    #allocation4 [shape = 's32[2]{0}', space=sflag, size = 0x8, scoped, tag = 'scoped memory for tpu_custom_call.1']
    #allocation5 [shape = 'u8[131072]{0}', space=vmem, size = 0x20000, scoped, tag = 'input window, operand 1']
    #allocation6 [shape = 's32[2]{0}', space=sflag, size = 0x8, scoped, tag = 'scoped memory for tpu_custom_call.1']
    #allocation7 [shape = 'u8[131072]{0}', space=vmem, size = 0x20000, scoped, tag = 'input window, operand 2']
    #allocation8 [shape = 'u8[8192]{0}', space=vmem, size = 0x2000, scoped, tag = 'output window, operand 0']
    %12 = vsyncpa [#allocation3], 0
    %13 = vsyncpa [#allocation6], 0
    %s14 = scalar_lea.sflag [#allocation6], 1
    %15 = vsyncpa %s14, 0
    %16 = vsyncpa [#allocation4], 0
    %s17 = scalar_lea.sflag [#allocation4], 1
    %18 = vsyncpa %s17, 0
    loop: start=0, step=1, limit=4
    $region2: #{tpu_custom_call.1} parent=1 // loop_pre_header
      _
    $region3: #{tpu_custom_call.1} parent=1 // loop_header
      %s20 = sphi 0, %s24
      %p21 = scmp.ge.s32.totalorder %s20, 4
      %s27 = sphi 0, %s46
      %s28 = sphi 0, %s42
      %s29 = sphi 0, %s38
      %s30 = sphi 0, %s27
      %s31 = sphi 0, %s28
      %s32 = sphi 0, %s29
      %s33 = sphi 0, %s30
      %s34 = sphi 0, %s31
      %s35 = sphi 0, %s32
      %s51 = sphi 0, %s53
      %s54 = sphi 0, %s51
      %s55 = sphi 0, %s54
      %s71 = sphi 0, %s55
      %s79 = sphi 0, %s81
      %s82 = sphi 0, %s79
      %s83 = sphi 0, %s82
      %s99 = sphi 0, %s83
      %s107 = sphi 0, %s109
      %s110 = sphi 0, %s107
      %s111 = sphi 0, %s110
      %s127 = sphi 0, %s111
      %s131 = sphi 0, %s131
      %s133 = sphi 0, %s131
      %s134 = sphi 0, %s133
      %s148 = sphi 0, %s134
      %s152 = sphi 0, %s152
      %s154 = sphi 0, %s152
      %s155 = sphi 0, %s154
      %s169 = sphi 0, %s155
      %s173 = sphi 0, %s173
      %s175 = sphi 0, %s173
      %s176 = sphi 0, %s175
      %s190 = sphi 0, %s176
      %s194 = sphi 0, %s194
      %s196 = sphi 0, %s194
      %s197 = sphi 0, %s196
      %s211 = sphi 0, %s197
      %s219 = sphi 0, %s221
      %s222 = sphi 0, %s219
      %s223 = sphi 0, %s222
      %s239 = sphi 0, %s223
    $region4: #{tpu_custom_call.1} parent=1 // loop_header_branch
      %23 = sbr.rel (%p21) target = $region8
    $region5: #{tpu_custom_call.1} parent=1 // loop_body
      %s25 = ssub.s32 %s20, 1
      %s26 = ssub.s32 %s20, 2
      %s36 = sadd.s32 1, %s29
      %p37 = scmp.ge.s32.totalorder %s36, 1
      %s38 = scalar_select %p37, 0, %s36
      %s39 = sadd.s32 1, %s28
      %s40 = scalar_select %p37, %s39, %s28
      %p41 = scmp.ge.s32.totalorder %s40, 2
      %s42 = scalar_select %p41, 0, %s40
      %s43 = sadd.s32 1, %s27
      %s44 = scalar_select %p41, %s43, %s27
      %p45 = scmp.ge.s32.totalorder %s44, 1
      %s46 = scalar_select %p45, 0, %s44
      %s47 = ssub.s32 %s27, %s46
      %s48 = ssub.s32 %s29, %s38
      %s49 = sor.u32 %s47, %s48
      %p50 = scmp.eq.s32.totalorder %s49, 0
      %s52 = sadd.s32 %s51, 1
      %s53 = scalar_select %p50, %s51, %s52
      %p56 = pneg %p50
      %p57 = scmp.eq.s32.totalorder %s20, 1
      %p58 = por %p56, %p57
      %p59 = scmp.ne.s32.totalorder %s51, %s54
      %p60 = scmp.eq.s32.totalorder %s20, 0
      %p61 = por %p59, %p60
      %p62 = scmp.ne.s32.totalorder %s51, %s54
      %p63 = scmp.eq.s32.totalorder %s25, 1
      %p64 = por %p62, %p63
      %p65 = scmp.ne.s32.totalorder %s54, %s55
      %p66 = scmp.eq.s32.totalorder %s25, 0
      %p67 = por %p65, %p66
      %p68 = scmp.ne.s32.totalorder %s54, %s55
      %p69 = scmp.eq.s32.totalorder %s26, 1
      %p70 = por %p68, %p69
      %p72 = scmp.ne.s32.totalorder %s55, %s71
      %p73 = scmp.eq.s32.totalorder %s26, 0
      %p74 = por %p72, %p73
      %s75 = ssub.s32 %s29, %s38
      %s76 = ssub.s32 %s28, %s42
      %s77 = sor.u32 %s75, %s76
      %p78 = scmp.eq.s32.totalorder %s77, 0
      %s80 = sadd.s32 %s79, 1
      %s81 = scalar_select %p78, %s79, %s80
      %p84 = pneg %p78
      %p85 = scmp.eq.s32.totalorder %s20, 1
      %p86 = por %p84, %p85
      %p87 = scmp.ne.s32.totalorder %s79, %s82
      %p88 = scmp.eq.s32.totalorder %s20, 0
      %p89 = por %p87, %p88
      %p90 = scmp.ne.s32.totalorder %s79, %s82
      %p91 = scmp.eq.s32.totalorder %s25, 1
      %p92 = por %p90, %p91
      %p93 = scmp.ne.s32.totalorder %s82, %s83
      %p94 = scmp.eq.s32.totalorder %s25, 0
      %p95 = por %p93, %p94
      %p96 = scmp.ne.s32.totalorder %s82, %s83
      %p97 = scmp.eq.s32.totalorder %s26, 1
      %p98 = por %p96, %p97
      %p100 = scmp.ne.s32.totalorder %s83, %s99
      %p101 = scmp.eq.s32.totalorder %s26, 0
      %p102 = por %p100, %p101
      %s103 = ssub.s32 %s29, %s38
      %s104 = ssub.s32 %s28, %s42
      %s105 = sor.u32 %s103, %s104
      %p106 = scmp.eq.s32.totalorder %s105, 0
      %s108 = sadd.s32 %s107, 1
      %s109 = scalar_select %p106, %s107, %s108
      %p112 = pneg %p106
      %p113 = scmp.eq.s32.totalorder %s20, 1
      %p114 = por %p112, %p113
      %p115 = scmp.ne.s32.totalorder %s107, %s110
      %p116 = scmp.eq.s32.totalorder %s20, 0
      %p117 = por %p115, %p116
      %p118 = scmp.ne.s32.totalorder %s107, %s110
      %p119 = scmp.eq.s32.totalorder %s25, 1
      %p120 = por %p118, %p119
      %p121 = scmp.ne.s32.totalorder %s110, %s111
      %p122 = scmp.eq.s32.totalorder %s25, 0
      %p123 = por %p121, %p122
      %p124 = scmp.ne.s32.totalorder %s110, %s111
      %p125 = scmp.eq.s32.totalorder %s26, 1
      %p126 = por %p124, %p125
      %p128 = scmp.ne.s32.totalorder %s111, %s127
      %p129 = scmp.eq.s32.totalorder %s26, 0
      %p130 = por %p128, %p129
      %s132 = sadd.s32 %s131, 1
      %p135 = scmp.eq.s32.totalorder %s20, 1
      %p136 = scmp.ne.s32.totalorder %s131, %s133
      %p137 = scmp.eq.s32.totalorder %s20, 0
      %p138 = por %p136, %p137
      %p139 = scmp.ne.s32.totalorder %s131, %s133
      %p140 = scmp.eq.s32.totalorder %s25, 1
      %p141 = por %p139, %p140
      %p142 = scmp.ne.s32.totalorder %s133, %s134
      %p143 = scmp.eq.s32.totalorder %s25, 0
      %p144 = por %p142, %p143
      %p145 = scmp.ne.s32.totalorder %s133, %s134
      %p146 = scmp.eq.s32.totalorder %s26, 1
      %p147 = por %p145, %p146
      %p149 = scmp.ne.s32.totalorder %s134, %s148
      %p150 = scmp.eq.s32.totalorder %s26, 0
      %p151 = por %p149, %p150
      %s153 = sadd.s32 %s152, 1
      %p156 = scmp.eq.s32.totalorder %s20, 1
      %p157 = scmp.ne.s32.totalorder %s152, %s154
      %p158 = scmp.eq.s32.totalorder %s20, 0
      %p159 = por %p157, %p158
      %p160 = scmp.ne.s32.totalorder %s152, %s154
      %p161 = scmp.eq.s32.totalorder %s25, 1
      %p162 = por %p160, %p161
      %p163 = scmp.ne.s32.totalorder %s154, %s155
      %p164 = scmp.eq.s32.totalorder %s25, 0
      %p165 = por %p163, %p164
      %p166 = scmp.ne.s32.totalorder %s154, %s155
      %p167 = scmp.eq.s32.totalorder %s26, 1
      %p168 = por %p166, %p167
      %p170 = scmp.ne.s32.totalorder %s155, %s169
      %p171 = scmp.eq.s32.totalorder %s26, 0
      %p172 = por %p170, %p171
      %s174 = sadd.s32 %s173, 1
      %p177 = scmp.eq.s32.totalorder %s20, 1
      %p178 = scmp.ne.s32.totalorder %s173, %s175
      %p179 = scmp.eq.s32.totalorder %s20, 0
      %p180 = por %p178, %p179
      %p181 = scmp.ne.s32.totalorder %s173, %s175
      %p182 = scmp.eq.s32.totalorder %s25, 1
      %p183 = por %p181, %p182
      %p184 = scmp.ne.s32.totalorder %s175, %s176
      %p185 = scmp.eq.s32.totalorder %s25, 0
      %p186 = por %p184, %p185
      %p187 = scmp.ne.s32.totalorder %s175, %s176
      %p188 = scmp.eq.s32.totalorder %s26, 1
      %p189 = por %p187, %p188
      %p191 = scmp.ne.s32.totalorder %s176, %s190
      %p192 = scmp.eq.s32.totalorder %s26, 0
      %p193 = por %p191, %p192
      %s195 = sadd.s32 %s194, 1
      %p198 = scmp.eq.s32.totalorder %s20, 1
      %p199 = scmp.ne.s32.totalorder %s194, %s196
      %p200 = scmp.eq.s32.totalorder %s20, 0
      %p201 = por %p199, %p200
      %p202 = scmp.ne.s32.totalorder %s194, %s196
      %p203 = scmp.eq.s32.totalorder %s25, 1
      %p204 = por %p202, %p203
      %p205 = scmp.ne.s32.totalorder %s196, %s197
      %p206 = scmp.eq.s32.totalorder %s25, 0
      %p207 = por %p205, %p206
      %p208 = scmp.ne.s32.totalorder %s196, %s197
      %p209 = scmp.eq.s32.totalorder %s26, 1
      %p210 = por %p208, %p209
      %p212 = scmp.ne.s32.totalorder %s197, %s211
      %p213 = scmp.eq.s32.totalorder %s26, 0
      %p214 = por %p212, %p213
      %s215 = ssub.s32 %s27, %s46
      %s216 = ssub.s32 %s28, %s42
      %s217 = sor.u32 %s215, %s216
      %p218 = scmp.eq.s32.totalorder %s217, 0
      %s220 = sadd.s32 %s219, 1
      %s221 = scalar_select %p218, %s219, %s220
      %p224 = pneg %p218
      %p225 = scmp.eq.s32.totalorder %s20, 1
      %p226 = por %p224, %p225
      %p227 = scmp.ne.s32.totalorder %s219, %s222
      %p228 = scmp.eq.s32.totalorder %s20, 0
      %p229 = por %p227, %p228
      %p230 = scmp.ne.s32.totalorder %s219, %s222
      %p231 = scmp.eq.s32.totalorder %s25, 1
      %p232 = por %p230, %p231
      %p233 = scmp.ne.s32.totalorder %s222, %s223
      %p234 = scmp.eq.s32.totalorder %s25, 0
      %p235 = por %p233, %p234
      %p236 = scmp.ne.s32.totalorder %s222, %s223
      %p237 = scmp.eq.s32.totalorder %s26, 1
      %p238 = por %p236, %p237
      %p240 = scmp.ne.s32.totalorder %s223, %s239
      %p241 = scmp.eq.s32.totalorder %s26, 0
      %p242 = por %p240, %p241
      %p243 = scmp.le.s32.totalorder 1, %s20
      %p244 = scmp.lt.s32.totalorder %s20, 3
      %p245 = pnand %p243, %p244
      %p246 = pneg %p245
      // Predicated region
      $region9: #{tpu_custom_call.1} parent=5 // pred_check
        _
      $region10: #{tpu_custom_call.1} parent=5 // pred_check_branch
        %248 = sbr.rel (%p245) target = $region12
      $region11: #{tpu_custom_call.1} parent=5 // pred_region
        %s249 = ssub.s32 %s20, 1
        // Predicated region
        $region13: #{tpu_custom_call.1} parent=11 // pred_check
          %p250 = pneg %p67
        $region14: #{tpu_custom_call.1} parent=11 // pred_check_branch
          %252 = sbr.rel (%p250) target = $region16
        $region15: #{tpu_custom_call.1} parent=11 // pred_region
          %s254 = ssub.s32 128, 128
          %255 = vsyncadd [#allocation3], %s254
          %s256 = sadd.s32 %s32, %s30
          %s257 = smul.addr %s256, 128
          %s258 = scalar_lea.hbm %s0, %s257
          %s260 = sshll.u32 [#allocation2], 4
          %s261 = int_to_ptr.vmem [resolvable:$true] %s260
          %263 = dma.hbm_to_vmem [thread:$0]  %s258, 128, %s261, [#allocation3]
        $region16: #{tpu_custom_call.1} parent=11 // pred_fallthru
          _
        // Predicated region
        $region17: #{tpu_custom_call.1} parent=11 // pred_check
          %p264 = pneg %p144
        $region18: #{tpu_custom_call.1} parent=11 // pred_check_branch
          %266 = sbr.rel (%p264) target = $region20
        $region19: #{tpu_custom_call.1} parent=11 // pred_region
          _
        $region20: #{tpu_custom_call.1} parent=11 // pred_fallthru
          _
        // Predicated region
        $region21: #{tpu_custom_call.1} parent=11 // pred_check
          %p267 = pneg %p165
        $region22: #{tpu_custom_call.1} parent=11 // pred_check_branch
          %269 = sbr.rel (%p267) target = $region24
        $region23: #{tpu_custom_call.1} parent=11 // pred_region
          _
        $region24: #{tpu_custom_call.1} parent=11 // pred_fallthru
          _
        // Predicated region
        $region25: #{tpu_custom_call.1} parent=11 // pred_check
          %p270 = pneg %p186
        $region26: #{tpu_custom_call.1} parent=11 // pred_check_branch
          %272 = sbr.rel (%p270) target = $region28
        $region27: #{tpu_custom_call.1} parent=11 // pred_region
          _
        $region28: #{tpu_custom_call.1} parent=11 // pred_fallthru
          _
        // Predicated region
        $region29: #{tpu_custom_call.1} parent=11 // pred_check
          %p273 = pneg %p207
        $region30: #{tpu_custom_call.1} parent=11 // pred_check_branch
          %275 = sbr.rel (%p273) target = $region32
        $region31: #{tpu_custom_call.1} parent=11 // pred_region
          _
        $region32: #{tpu_custom_call.1} parent=11 // pred_fallthru
          _
      $region12: #{tpu_custom_call.1} parent=5 // pred_fallthru
        _
      %p276 = scmp.lt.s32.totalorder %s20, 2
      // Predicated region
      $region33: #{tpu_custom_call.1} parent=5 // pred_check
        %p277 = pneg %p276
      $region34: #{tpu_custom_call.1} parent=5 // pred_check_branch
        %279 = sbr.rel (%p277) target = $region36
      $region35: #{tpu_custom_call.1} parent=5 // pred_region
        // Predicated region
        $region37: #{tpu_custom_call.1} parent=35 // pred_check
          %p280 = pneg %p89
        $region38: #{tpu_custom_call.1} parent=35 // pred_check_branch
          %282 = sbr.rel (%p280) target = $region40
        $region39: #{tpu_custom_call.1} parent=35 // pred_region
          %s283 = sand.u32 %s20, 1
          %s284 = scalar_lea.sflag [#allocation6], %s283
          %s285 = sand.u32 %s79, 1
          %s286 = smul.addr %s285, 128
          %s287 = scalar_lea.vmem [#allocation5], %s286
          %s288 = smul.u32 16, %s29
          %s290 = ssub.s32 2048, 2048
          %291 = vsyncadd %s284, %s290
          %s292 = smul.addr %s288, 2
          %s293 = sadd.s32 %s28, %s292
          %s294 = smul.addr %s293, 128
          %s295 = scalar_lea.hbm %s1, %s294
          %s296 = sshll.u32 %s287, 4
          %s297 = int_to_ptr.vmem [resolvable:$true] %s296
          %302 = dma.hbm_to_vmem [thread:$0]  %s295, 2048, %s297, %s284, 256, 128, 8
        $region40: #{tpu_custom_call.1} parent=35 // pred_fallthru
          _
        // Predicated region
        $region41: #{tpu_custom_call.1} parent=35 // pred_check
          %p303 = pneg %p117
        $region42: #{tpu_custom_call.1} parent=35 // pred_check_branch
          %305 = sbr.rel (%p303) target = $region44
        $region43: #{tpu_custom_call.1} parent=35 // pred_region
          %s306 = sand.u32 %s20, 1
          %s307 = scalar_lea.sflag [#allocation6], %s306
          %s308 = sand.u32 %s107, 1
          %s309 = smul.addr %s308, 128
          %s310 = scalar_lea.vmem [#allocation7], %s309
          %s311 = smul.u32 16, %s29
          %s313 = ssub.s32 2048, 2048
          %314 = vsyncadd %s307, %s313
          %s315 = smul.addr %s311, 2
          %s316 = sadd.s32 %s28, %s315
          %s317 = smul.addr %s316, 128
          %s318 = scalar_lea.hbm %s2, %s317
          %s319 = sshll.u32 %s310, 4
          %s320 = int_to_ptr.vmem [resolvable:$true] %s319
          %325 = dma.hbm_to_vmem [thread:$0]  %s318, 2048, %s320, %s307, 256, 128, 8
        $region44: #{tpu_custom_call.1} parent=35 // pred_fallthru
          _
      $region36: #{tpu_custom_call.1} parent=5 // pred_fallthru
        _
      %p326 = scmp.le.s32.totalorder 1, %s20
      %p327 = scmp.lt.s32.totalorder %s20, 3
      %p328 = pnand %p326, %p327
      %p329 = pneg %p328
      // Predicated region
      $region45: #{tpu_custom_call.1} parent=5 // pred_check
        _
      $region46: #{tpu_custom_call.1} parent=5 // pred_check_branch
        %331 = sbr.rel (%p328) target = $region48
      $region47: #{tpu_custom_call.1} parent=5 // pred_region
        %s332 = ssub.s32 %s20, 1
        // Predicated region
        $region49: #{tpu_custom_call.1} parent=47 // pred_check
          %p333 = pneg %p67
        $region50: #{tpu_custom_call.1} parent=47 // pred_check_branch
          %335 = sbr.rel (%p333) target = $region52
        $region51: #{tpu_custom_call.1} parent=47 // pred_region
          %336 = dma.done [#allocation3], 128
        $region52: #{tpu_custom_call.1} parent=47 // pred_fallthru
          _
        %s337 = sand.u32 %s25, 1
        %s338 = scalar_lea.sflag [#allocation6], %s337
        %s339 = sand.u32 %s82, 1
        %s340 = smul.addr %s339, 128
        %s341 = scalar_lea.vmem [#allocation5], %s340
        // Predicated region
        $region53: #{tpu_custom_call.1} parent=47 // pred_check
          %p342 = pneg %p95
        $region54: #{tpu_custom_call.1} parent=47 // pred_check_branch
          %344 = sbr.rel (%p342) target = $region56
        $region55: #{tpu_custom_call.1} parent=47 // pred_region
          %345 = dma.done %s338, 2048
        $region56: #{tpu_custom_call.1} parent=47 // pred_fallthru
          _
        %s346 = sand.u32 %s25, 1
        %s347 = scalar_lea.sflag [#allocation6], %s346
        %s348 = sand.u32 %s110, 1
        %s349 = smul.addr %s348, 128
        %s350 = scalar_lea.vmem [#allocation7], %s349
        // Predicated region
        $region57: #{tpu_custom_call.1} parent=47 // pred_check
          %p351 = pneg %p123
        $region58: #{tpu_custom_call.1} parent=47 // pred_check_branch
          %353 = sbr.rel (%p351) target = $region60
        $region59: #{tpu_custom_call.1} parent=47 // pred_region
          %354 = dma.done %s347, 2048
        $region60: #{tpu_custom_call.1} parent=47 // pred_fallthru
          _
        %p355 = pneg %p67
        %p356 = pneg %p64
        %s357 = sand.u32 %s25, 1
        %s358 = scalar_lea.sflag [#allocation6], %s357
        %s359 = sand.u32 %s82, 1
        %s360 = smul.addr %s359, 128
        %s361 = scalar_lea.vmem [#allocation5], %s360
        %p362 = pneg %p95
        %p363 = pneg %p92
        %s364 = sand.u32 %s25, 1
        %s365 = scalar_lea.sflag [#allocation6], %s364
        %s366 = sand.u32 %s110, 1
        %s367 = smul.addr %s366, 128
        %s368 = scalar_lea.vmem [#allocation7], %s367
        %p369 = pneg %p123
        %p370 = pneg %p120
        %p371 = pneg %p144
        %p372 = pneg %p141
        %p373 = pneg %p165
        %p374 = pneg %p162
        %p375 = pneg %p186
        %p376 = pneg %p183
        %p377 = pneg %p207
        %p378 = pneg %p204
        %p379 = pneg %p235
        %p380 = pneg %p232
        %s381 = sand.u32 %s222, 1
        %s382 = scalar_lea.sflag [#allocation4], %s381
        %s383 = sand.u32 %s222, 1
        %s384 = smul.addr %s383, 8
        %s385 = scalar_lea.vmem [#allocation8], %s384
        %s386 = smul.u32 16, %s32
        %s387 = smul.u32 16, %s32
        %s388 = smul.u32 %s32, 128
        %s389 = sshra.s32 %s388, 7
        %s390 = sand.u32 %s388, 127
        %s391 = scalar_lea.vmem %s3, %s389
        %v392 = vld [vmem:[%s391] sm:$0x1]
        %v393 = vld [vmem:[#allocation2] sm:$0xff]
        %v395 = vlaneseq
        %v396 = vshrl.u32 %v395, 7
        %v397 = vsub.s32 0, %v396
        %v398 = vrot.slane %v392, %v397
        %v400 = vmul.f32 %v393, %v398
        %v401 = vld [vmem:[%s341] sm:$0xff]
        %v402 = vld [vmem:[%s341 + $0x8] sm:$0xff]
        %v403 = vld [vmem:[%s341 + $0x10] sm:$0xff]
        %v404 = vld [vmem:[%s341 + $0x18] sm:$0xff]
        %v405 = vld [vmem:[%s341 + $0x20] sm:$0xff]
        %v406 = vld [vmem:[%s341 + $0x28] sm:$0xff]
        %v407 = vld [vmem:[%s341 + $0x30] sm:$0xff]
        %v408 = vld [vmem:[%s341 + $0x38] sm:$0xff]
        %v409 = vld [vmem:[%s341 + $0x40] sm:$0xff]
        %v410 = vld [vmem:[%s341 + $0x48] sm:$0xff]
        %v411 = vld [vmem:[%s341 + $0x50] sm:$0xff]
        %v412 = vld [vmem:[%s341 + $0x58] sm:$0xff]
        %v413 = vld [vmem:[%s341 + $0x60] sm:$0xff]
        %v414 = vld [vmem:[%s341 + $0x68] sm:$0xff]
        %v415 = vld [vmem:[%s341 + $0x70] sm:$0xff]
        %v416 = vld [vmem:[%s341 + $0x78] sm:$0xff]
        %v417 = vld [vmem:[%s350] sm:$0xff]
        %v418 = vld [vmem:[%s350 + $0x8] sm:$0xff]
        %v419 = vld [vmem:[%s350 + $0x10] sm:$0xff]
        %v420 = vld [vmem:[%s350 + $0x18] sm:$0xff]
        %v421 = vld [vmem:[%s350 + $0x20] sm:$0xff]
        %v422 = vld [vmem:[%s350 + $0x28] sm:$0xff]
        %v423 = vld [vmem:[%s350 + $0x30] sm:$0xff]
        %v424 = vld [vmem:[%s350 + $0x38] sm:$0xff]
        %v425 = vld [vmem:[%s350 + $0x40] sm:$0xff]
        %v426 = vld [vmem:[%s350 + $0x48] sm:$0xff]
        %v427 = vld [vmem:[%s350 + $0x50] sm:$0xff]
        %v428 = vld [vmem:[%s350 + $0x58] sm:$0xff]
        %v429 = vld [vmem:[%s350 + $0x60] sm:$0xff]
        %v430 = vld [vmem:[%s350 + $0x68] sm:$0xff]
        %v431 = vld [vmem:[%s350 + $0x70] sm:$0xff]
        %v432 = vld [vmem:[%s350 + $0x78] sm:$0xff]
        %433 = vmatprep.subr.mxu0 0.0
        %434 = vmatpush1.msra.mxu0 %v417
        %435 = vmatprep.subr.mxu0 0.0
        %436 = vmatpush1.msra.mxu0 %v418
        %437 = vmatprep.subr.mxu0 0.0
        %438 = vmatpush1.msra.mxu0 %v419
        %439 = vmatprep.subr.mxu0 0.0
        %440 = vmatpush1.msra.mxu0 %v420
        %441 = vmatprep.subr.mxu0 0.0
        %442 = vmatpush1.msra.mxu0 %v421
        %443 = vmatprep.subr.mxu0 0.0
        %444 = vmatpush1.msra.mxu0 %v422
        %445 = vmatprep.subr.mxu0 0.0
        %446 = vmatpush1.msra.mxu0 %v423
        %447 = vmatprep.subr.mxu0 0.0
        %448 = vmatpush1.msra.mxu0 %v424
        %449 = vmatprep.subr.mxu0 0.0
        %450 = vmatpush1.msra.mxu0 %v425
        %451 = vmatprep.subr.mxu0 0.0
        %452 = vmatpush1.msra.mxu0 %v426
        %453 = vmatprep.subr.mxu0 0.0
        %454 = vmatpush1.msra.mxu0 %v427
        %455 = vmatprep.subr.mxu0 0.0
        %456 = vmatpush1.msra.mxu0 %v428
        %457 = vmatprep.subr.mxu0 0.0
        %458 = vmatpush1.msra.mxu0 %v429
        %459 = vmatprep.subr.mxu0 0.0
        %460 = vmatpush1.msra.mxu0 %v430
        %461 = vmatprep.subr.mxu0 0.0
        %462 = vmatpush1.msra.mxu0 %v431
        %463 = vmatprep.subr.mxu0 0.0
        %464 = vmatpush1.msra.mxu0 %v432
        %465 = vmatprep.subr.mxu0 0.0
        %466 = vmatpush1.msra.mxu0 0.0
        %467 = vmatprep.subr.mxu0 0.0
        %468 = vmatpush1.msra.mxu0 0.0
        %469 = vmatprep.subr.mxu0 0.0
        %470 = vmatpush1.msra.mxu0 0.0
        %471 = vmatprep.subr.mxu0 0.0
        %472 = vmatpush1.msra.mxu0 0.0
        %473 = vmatprep.subr.mxu0 0.0
        %474 = vmatpush1.msra.mxu0 0.0
        %475 = vmatprep.subr.mxu0 0.0
        %476 = vmatpush1.msra.mxu0 0.0
        %477 = vmatprep.subr.mxu0 0.0
        %478 = vmatpush1.msra.mxu0 0.0
        %479 = vmatprep.subr.mxu0 0.0
        %480 = vmatpush1.msra.mxu0 0.0
        %481 = vmatprep.subr.mxu0 0.0
        %482 = vmatpush1.msra.mxu0 0.0
        %483 = vmatprep.subr.mxu0 0.0
        %484 = vmatpush1.msra.mxu0 0.0
        %485 = vmatprep.subr.mxu0 0.0
        %486 = vmatpush1.msra.mxu0 0.0
        %487 = vmatprep.subr.mxu0 0.0
        %488 = vmatpush1.msra.mxu0 0.0
        %489 = vmatprep.subr.mxu0 0.0
        %490 = vmatpush1.msra.mxu0 0.0
        %491 = vmatprep.subr.mxu0 0.0
        %492 = vmatpush1.msra.mxu0 0.0
        %493 = vmatprep.subr.mxu0 0.0
        %494 = vmatpush1.msra.mxu0 0.0
        %495 = vmatprep.subr.mxu0 0.0
        %496 = vmatpush1.msra.mxu0 0.0
        %497 = vmatprep.mubr.f32.mxu0 0.0
        %498 = vmatmul.mubr.f32.gmra.mrb[0].mxu0 %v400
        %v499 = vpop.f32.mrb[0].mxu0
        %v500 = vadd.f32 0.0, %v499
        %v501 = vpop.f32.mrb[0].mxu0
        %502 = vdwg.mxu0
        %s503 = smul.u32 %s31, 128
        %s504 = sshra.s32 %s503, 7
        %s505 = sand.u32 %s503, 127
        %s506 = scalar_lea.vmem %s4, %s504
        %v507 = vld [vmem:[%s506] sm:$0x1]
        %s508 = scalar_lea.vmem %s5, %s504
        %v509 = vld [vmem:[%s508] sm:$0x1]
        %s510 = scalar_lea.vmem %s6, %s504
        %v511 = vld [vmem:[%s510] sm:$0x1]
        %v512 = vmul.f32 %v511, %v507
        %v513 = vadd.f32 %v509, %v512
        %v515 = vlaneseq
        %v516 = vshrl.u32 %v515, 7
        %v517 = vsub.s32 0, %v516
        %v518 = vrot.slane %v507, %v517
        %v520 = vmul.f32 %v500, %v518
        %521 = vmatprep.subr.mxu0 0.0
        %522 = vmatpush1.msra.mxu0 %v401
        %523 = vmatprep.subr.mxu0 0.0
        %524 = vmatpush1.msra.mxu0 %v402
        %525 = vmatprep.subr.mxu0 0.0
        %526 = vmatpush1.msra.mxu0 %v403
        %527 = vmatprep.subr.mxu0 0.0
        %528 = vmatpush1.msra.mxu0 %v404
        %529 = vmatprep.subr.mxu0 0.0
        %530 = vmatpush1.msra.mxu0 %v405
        %531 = vmatprep.subr.mxu0 0.0
        %532 = vmatpush1.msra.mxu0 %v406
        %533 = vmatprep.subr.mxu0 0.0
        %534 = vmatpush1.msra.mxu0 %v407
        %535 = vmatprep.subr.mxu0 0.0
        %536 = vmatpush1.msra.mxu0 %v408
        %537 = vmatprep.subr.mxu0 0.0
        %538 = vmatpush1.msra.mxu0 %v409
        %539 = vmatprep.subr.mxu0 0.0
        %540 = vmatpush1.msra.mxu0 %v410
        %541 = vmatprep.subr.mxu0 0.0
        %542 = vmatpush1.msra.mxu0 %v411
        %543 = vmatprep.subr.mxu0 0.0
        %544 = vmatpush1.msra.mxu0 %v412
        %545 = vmatprep.subr.mxu0 0.0
        %546 = vmatpush1.msra.mxu0 %v413
        %547 = vmatprep.subr.mxu0 0.0
        %548 = vmatpush1.msra.mxu0 %v414
        %549 = vmatprep.subr.mxu0 0.0
        %550 = vmatpush1.msra.mxu0 %v415
        %551 = vmatprep.subr.mxu0 0.0
        %552 = vmatpush1.msra.mxu0 %v416
        %553 = vmatprep.subr.mxu0 0.0
        %554 = vmatpush1.msra.mxu0 0.0
        %555 = vmatprep.subr.mxu0 0.0
        %556 = vmatpush1.msra.mxu0 0.0
        %557 = vmatprep.subr.mxu0 0.0
        %558 = vmatpush1.msra.mxu0 0.0
        %559 = vmatprep.subr.mxu0 0.0
        %560 = vmatpush1.msra.mxu0 0.0
        %561 = vmatprep.subr.mxu0 0.0
        %562 = vmatpush1.msra.mxu0 0.0
        %563 = vmatprep.subr.mxu0 0.0
        %564 = vmatpush1.msra.mxu0 0.0
        %565 = vmatprep.subr.mxu0 0.0
        %566 = vmatpush1.msra.mxu0 0.0
        %567 = vmatprep.subr.mxu0 0.0
        %568 = vmatpush1.msra.mxu0 0.0
        %569 = vmatprep.subr.mxu0 0.0
        %570 = vmatpush1.msra.mxu0 0.0
        %571 = vmatprep.subr.mxu0 0.0
        %572 = vmatpush1.msra.mxu0 0.0
        %573 = vmatprep.subr.mxu0 0.0
        %574 = vmatpush1.msra.mxu0 0.0
        %575 = vmatprep.subr.mxu0 0.0
        %576 = vmatpush1.msra.mxu0 0.0
        %577 = vmatprep.subr.mxu0 0.0
        %578 = vmatpush1.msra.mxu0 0.0
        %579 = vmatprep.subr.mxu0 0.0
        %580 = vmatpush1.msra.mxu0 0.0
        %581 = vmatprep.subr.mxu0 0.0
        %582 = vmatpush1.msra.mxu0 0.0
        %583 = vmatprep.subr.mxu0 0.0
        %584 = vmatpush1.msra.mxu0 0.0
        %585 = vmatprep.mubr.f32.mxu0 0.0
        %586 = vmatmul.mubr.f32.gmra.mrb[0].mxu0 %v393
        %v587 = vpop.f32.mrb[0].mxu0
        %v588 = vadd.f32 %v520, %v587
        %v589 = vpop.f32.mrb[0].mxu0
        %590 = vdwg.mxu0
        %v592 = vlaneseq
        %v593 = vshrl.u32 %v592, 7
        %v594 = vsub.s32 0, %v593
        %v595 = vrot.slane %v513, %v594
        %v597 = vadd.f32 %v588, %v595
        %598 = vst [vmem:[%s385] sm:$0xff] %v597
        %s599 = sand.u32 %s222, 1
        %s600 = scalar_lea.sflag [#allocation4], %s599
        %s601 = sand.u32 %s222, 1
        %s602 = smul.addr %s601, 8
        %s603 = scalar_lea.vmem [#allocation8], %s602
        // Predicated region
        $region61: #{tpu_custom_call.1} parent=47 // pred_check
          %p604 = pneg %p232
        $region62: #{tpu_custom_call.1} parent=47 // pred_check_branch
          %606 = sbr.rel (%p604) target = $region64
        $region63: #{tpu_custom_call.1} parent=47 // pred_region
          %s608 = ssub.s32 128, 128
          %609 = vsyncadd %s600, %s608
          %s610 = smul.addr %s30, 2
          %s611 = sadd.s32 %s31, %s610
          %s612 = smul.addr %s611, 128
          %s613 = scalar_lea.hbm %s7, %s612
          %s615 = sshll.u32 %s603, 4
          %s616 = int_to_ptr.vmem [resolvable:$true] %s615
          %618 = dma.vmem_to_hbm [thread:$0]  %s616, 128, %s613, %s600
        $region64: #{tpu_custom_call.1} parent=47 // pred_fallthru
          _
      $region48: #{tpu_custom_call.1} parent=5 // pred_fallthru
        _
      %p619 = scmp.le.s32.totalorder 2, %s20
      // Predicated region
      $region65: #{tpu_custom_call.1} parent=5 // pred_check
        %p620 = pneg %p619
      $region66: #{tpu_custom_call.1} parent=5 // pred_check_branch
        %622 = sbr.rel (%p620) target = $region68
      $region67: #{tpu_custom_call.1} parent=5 // pred_region
        %s623 = ssub.s32 %s20, 2
        // Predicated region
        $region69: #{tpu_custom_call.1} parent=67 // pred_check
          %p624 = pneg %p238
        $region70: #{tpu_custom_call.1} parent=67 // pred_check_branch
          %626 = sbr.rel (%p624) target = $region72
        $region71: #{tpu_custom_call.1} parent=67 // pred_region
          %s627 = sand.u32 %s223, 1
          %s628 = scalar_lea.sflag [#allocation4], %s627
          %s629 = sand.u32 %s223, 1
          %s630 = smul.addr %s629, 8
          %s631 = scalar_lea.vmem [#allocation8], %s630
          %632 = dma.done %s628, 128
        $region72: #{tpu_custom_call.1} parent=67 // pred_fallthru
          _
      $region68: #{tpu_custom_call.1} parent=5 // pred_fallthru
        _
    $region6: #{tpu_custom_call.1} parent=1 // loop_footer
      %s24 = sadd.s32 1, %s20
    $region7: #{tpu_custom_call.1} parent=1 // loop_footer_branch
      %19 = sbr.rel target = $region3
    $region8: #{tpu_custom_call.1} parent=1 // loop_exit
      _
    %633 = vsyncpa [#allocation3], 1
    %s634 = scalar_lea.sflag [#allocation3], 1
    %635 = vsyncpa %s634, 1
    %636 = vsyncpa [#allocation6], 1
    %s637 = scalar_lea.sflag [#allocation6], 1
    %638 = vsyncpa %s637, 1
    %639 = vsyncpa [#allocation4], 1
    %s640 = scalar_lea.sflag [#allocation4], 1
    %641 = vsyncpa %s640, 1

</llo_original>
